<compile_context>
chip_gen: v7x
topology: tpu7x:2x2x1
jax: 0.10.0
libtpu: 0.0.40
codegen_flags: <defaults>
</compile_context>

<pallas_src>
import functools

import jax
import jax.numpy as jnp
from jax.experimental import pallas as pl
from jax.experimental.pallas import tpu as pltpu


def _round_up(x: int, m: int) -> int:
    return (x + m - 1) // m * m


def _make_kernel(use_sigmoid: bool):
    def kernel(x_ref, w0_ref, b0_ref, w1_ref, b1_ref, w2_ref, b2_ref, out_ref):
        # x_ref : (TB, P*L)
        # w0_ref: (P*L, F*H0)     b0_ref: (1, F*H0)
        # w1_ref: (F*H0, F*H1)    b1_ref: (1, F*H1)   (block-diagonal packing)
        # w2_ref: (F*H1, OUTP)    b2_ref: (1, OUTP)   (ecc + cls cols folded in)
        # out_ref: (TB, OUTP)     lane-dense output slab
        h = jnp.dot(x_ref[...], w0_ref[...],
                    preferred_element_type=jnp.float32) + b0_ref[...]
        h = jnp.maximum(h, 0.0)                                   # ReLU
        h = jnp.dot(h, w1_ref[...],
                    preferred_element_type=jnp.float32) + b1_ref[...]
        h = jnp.maximum(h, 0.0)                                   # ReLU
        raw = jnp.dot(h, w2_ref[...],
                      preferred_element_type=jnp.float32) + b2_ref[...]
        if use_sigmoid:
            out_ref[...] = jax.nn.sigmoid(raw)
        else:
            out_ref[...] = raw

    return kernel


def pack_cembedder_params(W0, B0, W1, B1, W2, B2, *, num_class_preds,
                          use_sigmoid, ecc, out_pad=128):
    """One-time parameter packing (outside the forward hot path).

    W0: (F, H0, P, L)  Conv1d(p, H0, lag).weight per factor
    B0: (F, H0)
    W1: (F, H1, H0)    Conv1d(H0, H1, 1).weight per factor
    B1: (F, H1)
    W2: (F, 1, H1)     Conv1d(H1, 1, 1).weight per factor
    B2: (F, 1)
    """
    F, H0, P, L = W0.shape
    H1 = W1.shape[1]
    C = num_class_preds
    OUTP = max(out_pad, _round_up(F + C, out_pad))

    # Layer 0: packed so the kernel consumes X.reshape(B, L*P) directly:
    #   w0p[l*P + c, f*H0 + h] = W0[f, h, c, l]
    w0p = jnp.transpose(W0, (3, 2, 0, 1)).reshape(L * P, F * H0)
    b0p = B0.reshape(1, F * H0).astype(jnp.float32)

    # Layer 1: block-diagonal (F*H0, F*H1) of the per-factor (H0, H1) weights.
    w1t = jnp.transpose(W1, (0, 2, 1))  # (F, H0, H1)
    w1bd = jnp.zeros((F * H0, F * H1), jnp.float32)
    for f in range(F):
        w1bd = w1bd.at[f * H0:(f + 1) * H0, f * H1:(f + 1) * H1].set(w1t[f])
    b1p = B1.reshape(1, F * H1).astype(jnp.float32)

    # Layer 2: pack into a single lane-dense (F*H1, OUTP) weight.
    #   cols 0:F      -> ecc * raw_f   (factor weightings, pre-sigmoid)
    #   cols F:F+C    -> raw_c         (class logits, pre-sigmoid)
    #   cols F+C:OUTP -> zero padding
    ecc_fw = float(ecc) if use_sigmoid else 1.0
    w2p = jnp.zeros((F * H1, OUTP), jnp.float32)
    b2p = jnp.zeros((1, OUTP), jnp.float32)
    for f in range(F):
        w2p = w2p.at[f * H1:(f + 1) * H1, f].set(ecc_fw * W2[f, 0, :])
        b2p = b2p.at[0, f].set(ecc_fw * B2[f, 0])
    for c in range(C):
        w2p = w2p.at[c * H1:(c + 1) * H1, F + c].set(W2[c, 0, :])
        b2p = b2p.at[0, F + c].set(B2[c, 0])

    return (w0p.astype(jnp.float32), b0p, w1bd, b1p, w2p, b2p)


@functools.partial(jax.jit, static_argnames=("num_factor_preds",
                                             "num_class_preds",
                                             "use_sigmoid"))
def cembedder_forward(X, w0p, b0p, w1bd, b1p, w2p, b2p, *,
                      num_factor_preds, num_class_preds, use_sigmoid):
    """X: (B, lag, p) float32.  Returns (factor_weightings (B,F), class_out (B,C))."""
    B, L, P = X.shape
    PL, FH0 = w0p.shape
    FH1 = w1bd.shape[1]
    OUTP = w2p.shape[1]
    assert PL == L * P  # T == lag (required by the Conv1d(p, H0, lag) collapse)

    # Pure reshape (no transpose op): w0p's rows are already permuted to match.
    x_flat = X.reshape(B, PL).astype(jnp.float32)

    # Batch tiling; single grid step when the (padded) batch fits one tile.
    TB = min(_round_up(B, 8), 256)
    B_pad = _round_up(B, TB)
    if B_pad != B:
        x_flat = jnp.pad(x_flat, ((0, B_pad - B), (0, 0)))

    kernel = _make_kernel(use_sigmoid)

    out = pl.pallas_call(
        kernel,
        out_shape=jax.ShapeDtypeStruct((B_pad, OUTP), jnp.float32),
        grid_spec=pltpu.PrefetchScalarGridSpec(
            num_scalar_prefetch=0,
            grid=(B_pad // TB,),
            in_specs=[
                pl.BlockSpec((TB, PL),    lambda i: (i, 0)),   # x batch tile
                pl.BlockSpec((PL, FH0),   lambda i: (0, 0)),   # W0 packed (resident)
                pl.BlockSpec((1, FH0),    lambda i: (0, 0)),   # b0
                pl.BlockSpec((FH0, FH1),  lambda i: (0, 0)),   # W1 block-diag
                pl.BlockSpec((1, FH1),    lambda i: (0, 0)),   # b1
                pl.BlockSpec((FH1, OUTP), lambda i: (0, 0)),   # W2 packed (+ecc, +cls)
                pl.BlockSpec((1, OUTP),   lambda i: (0, 0)),   # b2 packed
            ],
            out_specs=pl.BlockSpec((TB, OUTP), lambda i: (i, 0)),
        ),
        compiler_params=pltpu.CompilerParams(
            dimension_semantics=("parallel",)),
    )(x_flat, w0p, b0p, w1bd, b1p, w2p, b2p)

    factor_weightings = out[:B, :num_factor_preds]
    class_out = out[:B, num_factor_preds:num_factor_preds + num_class_preds]
    return factor_weightings, class_out


def reference_forward(X, W0, B0, W1, B1, W2, B2, *,
                      num_class_preds, use_sigmoid, ecc):
    """Pure-JAX reference reproducing the PyTorch cEmbedder forward."""
    F = W0.shape[0]
    cols = []
    for f in range(F):
        # Conv1d(p, H0, lag) on X.transpose(2,1), T == lag -> single position.
        h = jnp.einsum('blc,hcl->bh', X, W0[f]) + B0[f]
        h = jnp.maximum(h, 0.0)
        h = h @ W1[f].T + B1[f]
        h = jnp.maximum(h, 0.0)
        y = h @ W2[f, 0, :] + B2[f, 0]          # (B,)
        cols.append(y[:, None])
    fw = jnp.concatenate(cols, axis=1)          # (B, F)
    cls = fw[:, :num_class_preds]
    if use_sigmoid:
        cls = jax.nn.sigmoid(cls)
        fw = jax.nn.sigmoid(ecc * fw)
    return fw, cls


# TODO(synk): the GC() method and the wavelet-mask construction are init/analysis
# utilities (not part of the forward pass) and are not translated to Pallas.

if __name__ == "__main__":
    # Configuration consistent with cEmbedder.__init__:
    #   num_chans = 4, wavelet_level = None -> num_series = 4
    #   lag = 8, hidden = [32, 32], num_factor_preds = 5, num_class_preds = 2
    #   use_sigmoid_restriction = True, sigmoid_eccentricity_coeff = 2.0
    B = 8
    P = 4            # num_series
    LAG = 8
    H0, H1 = 32, 32
    F = 5            # num_factor_preds
    C = 2            # num_class_preds
    ECC = 2.0

    key = jax.random.PRNGKey(0)
    kx, k0, kb0, k1, kb1, k2, kb2 = jax.random.split(key, 7)

    X = jax.random.normal(kx, (B, LAG, P), dtype=jnp.float32)

    # Stacked per-factor Conv1d parameters (PyTorch weight conventions).
    W0 = 0.1 * jax.random.normal(k0, (F, H0, P, LAG), dtype=jnp.float32)
    B0 = 0.1 * jax.random.normal(kb0, (F, H0), dtype=jnp.float32)
    W1 = 0.1 * jax.random.normal(k1, (F, H1, H0), dtype=jnp.float32)
    B1 = 0.1 * jax.random.normal(kb1, (F, H1), dtype=jnp.float32)
    W2 = 0.1 * jax.random.normal(k2, (F, 1, H1), dtype=jnp.float32)
    B2 = 0.1 * jax.random.normal(kb2, (F, 1), dtype=jnp.float32)

    ok = True
    for use_sig in (True, False):
        packed = pack_cembedder_params(
            W0, B0, W1, B1, W2, B2,
            num_class_preds=C, use_sigmoid=use_sig, ecc=ECC)
        fw, cls = cembedder_forward(
            X, *packed,
            num_factor_preds=F, num_class_preds=C, use_sigmoid=use_sig)
        jax.block_until_ready((fw, cls))

        fw_ref, cls_ref = reference_forward(
            X, W0, B0, W1, B1, W2, B2,
            num_class_preds=C, use_sigmoid=use_sig, ecc=ECC)

        ok &= fw.shape == (B, F) and cls.shape == (B, C)
        ok &= bool(jnp.allclose(fw, fw_ref, atol=1e-5, rtol=1e-5))
        ok &= bool(jnp.allclose(cls, cls_ref, atol=1e-5, rtol=1e-5))

    assert ok
    print("KERNEL_OK")
</pallas_src>

<mosaic_0001>
module attributes {stable_mosaic.version = 11 : i64} {
  func.func @kernel(%arg0: i32, %arg1: memref<8x32xf32, #tpu.memory_space<vmem>>, %arg2: memref<32x160xf32, #tpu.memory_space<vmem>>, %arg3: memref<1x160xf32, #tpu.memory_space<vmem>>, %arg4: memref<160x160xf32, #tpu.memory_space<vmem>>, %arg5: memref<1x160xf32, #tpu.memory_space<vmem>>, %arg6: memref<160x128xf32, #tpu.memory_space<vmem>>, %arg7: memref<1x128xf32, #tpu.memory_space<vmem>>, %arg8: memref<8x128xf32, #tpu.memory_space<vmem>>) attributes {dimension_semantics = [#tpu.dimension_semantics<parallel>], iteration_bounds = array<i64: 1>, scalar_prefetch = 0 : i64, scratch_operands = 0 : i64, tpu.core_type = #tpu.core_type<tc>, window_params = [{transform_indices = @transform_0, window_bounds = array<i64: 8, 32>}, {pipeline_mode = #tpu.pipeline_mode<synchronous>, transform_indices = @transform_1, window_bounds = array<i64: 32, 160>}, {pipeline_mode = #tpu.pipeline_mode<synchronous>, transform_indices = @transform_2, window_bounds = array<i64: 1, 160>}, {pipeline_mode = #tpu.pipeline_mode<synchronous>, transform_indices = @transform_3, window_bounds = array<i64: 160, 160>}, {pipeline_mode = #tpu.pipeline_mode<synchronous>, transform_indices = @transform_4, window_bounds = array<i64: 1, 160>}, {pipeline_mode = #tpu.pipeline_mode<synchronous>, transform_indices = @transform_5, window_bounds = array<i64: 160, 128>}, {pipeline_mode = #tpu.pipeline_mode<synchronous>, transform_indices = @transform_6, window_bounds = array<i64: 1, 128>}, {transform_indices = @transform_7, window_bounds = array<i64: 8, 128>}]} {
    %c0 = arith.constant 0 : index
    %c0_0 = arith.constant 0 : index
    %0 = vector.load %arg1[%c0, %c0_0] : memref<8x32xf32, #tpu.memory_space<vmem>>, vector<8x32xf32>
    %c0_1 = arith.constant 0 : index
    %c0_2 = arith.constant 0 : index
    %1 = vector.load %arg2[%c0_1, %c0_2] : memref<32x160xf32, #tpu.memory_space<vmem>>, vector<32x160xf32>
    %cst = arith.constant dense<0.000000e+00> : vector<8x160xf32>
    %2 = tpu.matmul %0, %1, %cst {dimension_numbers = #tpu.dot_dimension_numbers<[1], [0], [0], [1], [0, 0, 1, 1], [], []>} : vector<8x32xf32>, vector<32x160xf32>, vector<8x160xf32> -> vector<8x160xf32>
    %c0_3 = arith.constant 0 : index
    %c0_4 = arith.constant 0 : index
    %3 = vector.load %arg3[%c0_3, %c0_4] : memref<1x160xf32, #tpu.memory_space<vmem>>, vector<1x160xf32>
    %4 = vector.broadcast %3 : vector<1x160xf32> to vector<8x160xf32>
    %5 = arith.addf %2, %4 : vector<8x160xf32>
    %cst_5 = arith.constant 0.000000e+00 : f32
    %6 = vector.broadcast %cst_5 : f32 to vector<8x160xf32>
    %7 = arith.maximumf %5, %6 : vector<8x160xf32>
    %c0_6 = arith.constant 0 : index
    %c0_7 = arith.constant 0 : index
    %8 = vector.load %arg4[%c0_6, %c0_7] : memref<160x160xf32, #tpu.memory_space<vmem>>, vector<160x160xf32>
    %cst_8 = arith.constant dense<0.000000e+00> : vector<8x160xf32>
    %9 = tpu.matmul %7, %8, %cst_8 {dimension_numbers = #tpu.dot_dimension_numbers<[1], [0], [0], [1], [0, 0, 1, 1], [], []>} : vector<8x160xf32>, vector<160x160xf32>, vector<8x160xf32> -> vector<8x160xf32>
    %c0_9 = arith.constant 0 : index
    %c0_10 = arith.constant 0 : index
    %10 = vector.load %arg5[%c0_9, %c0_10] : memref<1x160xf32, #tpu.memory_space<vmem>>, vector<1x160xf32>
    %11 = vector.broadcast %10 : vector<1x160xf32> to vector<8x160xf32>
    %12 = arith.addf %9, %11 : vector<8x160xf32>
    %cst_11 = arith.constant 0.000000e+00 : f32
    %13 = vector.broadcast %cst_11 : f32 to vector<8x160xf32>
    %14 = arith.maximumf %12, %13 : vector<8x160xf32>
    %c0_12 = arith.constant 0 : index
    %c0_13 = arith.constant 0 : index
    %15 = vector.load %arg6[%c0_12, %c0_13] : memref<160x128xf32, #tpu.memory_space<vmem>>, vector<160x128xf32>
    %cst_14 = arith.constant dense<0.000000e+00> : vector<8x128xf32>
    %16 = tpu.matmul %14, %15, %cst_14 {dimension_numbers = #tpu.dot_dimension_numbers<[1], [0], [0], [1], [0, 0, 1, 1], [], []>} : vector<8x160xf32>, vector<160x128xf32>, vector<8x128xf32> -> vector<8x128xf32>
    %c0_15 = arith.constant 0 : index
    %c0_16 = arith.constant 0 : index
    %17 = vector.load %arg7[%c0_15, %c0_16] : memref<1x128xf32, #tpu.memory_space<vmem>>, vector<1x128xf32>
    %18 = vector.broadcast %17 : vector<1x128xf32> to vector<8x128xf32>
    %19 = arith.addf %16, %18 : vector<8x128xf32>
    %20 = arith.negf %19 : vector<8x128xf32>
    %21 = math.exp %20 : vector<8x128xf32>
    %cst_17 = arith.constant 1.000000e+00 : f32
    %22 = vector.broadcast %cst_17 : f32 to vector<8x128xf32>
    %23 = arith.addf %22, %21 : vector<8x128xf32>
    %24 = arith.divf %22, %23 : vector<8x128xf32>
    %c0_18 = arith.constant 0 : index
    %c0_19 = arith.constant 0 : index
    %25 = vector.load %arg8[%c0_18, %c0_19] : memref<8x128xf32, #tpu.memory_space<vmem>>, vector<8x128xf32>
    tpu.vector_store %arg8[%c0_18, %c0_19], %24 {strides = array<i32>} : memref<8x128xf32, #tpu.memory_space<vmem>>, vector<8x128xf32>,
    return
  }
  func.func @transform_0(%arg0: i32) -> (i32, i32) {
    %c0_i32 = arith.constant 0 : i32
    %c0_i32_0 = arith.constant 0 : i32
    return %arg0, %c0_i32 : i32, i32
  }
  func.func @transform_1(%arg0: i32) -> (i32, i32) {
    %c0_i32 = arith.constant 0 : i32
    %c0_i32_0 = arith.constant 0 : i32
    %c0_i32_1 = arith.constant 0 : i32
    return %c0_i32, %c0_i32_0 : i32, i32
  }
  func.func @transform_2(%arg0: i32) -> (i32, i32) {
    %c0_i32 = arith.constant 0 : i32
    %c0_i32_0 = arith.constant 0 : i32
    %c0_i32_1 = arith.constant 0 : i32
    return %c0_i32, %c0_i32_0 : i32, i32
  }
  func.func @transform_3(%arg0: i32) -> (i32, i32) {
    %c0_i32 = arith.constant 0 : i32
    %c0_i32_0 = arith.constant 0 : i32
    %c0_i32_1 = arith.constant 0 : i32
    return %c0_i32, %c0_i32_0 : i32, i32
  }
  func.func @transform_4(%arg0: i32) -> (i32, i32) {
    %c0_i32 = arith.constant 0 : i32
    %c0_i32_0 = arith.constant 0 : i32
    %c0_i32_1 = arith.constant 0 : i32
    return %c0_i32, %c0_i32_0 : i32, i32
  }
  func.func @transform_5(%arg0: i32) -> (i32, i32) {
    %c0_i32 = arith.constant 0 : i32
    %c0_i32_0 = arith.constant 0 : i32
    %c0_i32_1 = arith.constant 0 : i32
    return %c0_i32, %c0_i32_0 : i32, i32
  }
  func.func @transform_6(%arg0: i32) -> (i32, i32) {
    %c0_i32 = arith.constant 0 : i32
    %c0_i32_0 = arith.constant 0 : i32
    %c0_i32_1 = arith.constant 0 : i32
    return %c0_i32, %c0_i32_0 : i32, i32
  }
  func.func @transform_7(%arg0: i32) -> (i32, i32) {
    %c0_i32 = arith.constant 0 : i32
    %c0_i32_0 = arith.constant 0 : i32
    return %arg0, %c0_i32 : i32, i32
  }
}

</mosaic_0001>

<llo_original>
// kernel: cembedder_forward.1
$region0: #{cembedder_forward.1}
  #allocation0 [shape = 'u32[]', space=smem, size = 0x4, offset = 0x4, fixed_abs, tag = 'smem constant byte address 0x4 - core index']
  #allocation1 [shape = 'u32[144,128]{1,0:T(1,128)}', space=vmem, size = 0x12000, scoped, tag = 'internal scratch']
  %s0 = inlined_call_operand.vmem [shape: f32[8,32], index: 0, kind: input, shape index: {}]
  %s1 = inlined_call_operand.vmem [shape: f32[32,160], index: 1, kind: input, shape index: {}]
  %s2 = inlined_call_operand.vmem [shape: f32[1,160], index: 2, kind: input, shape index: {}]
  %s3 = inlined_call_operand.hbm [shape: f32[160,160], index: 3, kind: input, shape index: {}]
  %s4 = inlined_call_operand.vmem [shape: f32[1,160], index: 4, kind: input, shape index: {}]
  %s5 = inlined_call_operand.hbm [shape: f32[160,128], index: 5, kind: input, shape index: {}]
  %s6 = inlined_call_operand.vmem [shape: f32[1,128], index: 6, kind: input, shape index: {}]
  %s7 = inlined_call_operand.vmem [shape: f32[8,128], index: 7, kind: output, shape index: {}]
  %s8 = sld [smem:[#allocation0]]
  $region46: #{cembedder_forward.1} parent=0
    _
  %s10 = ssub.s32 1, %s8
  %s11 = scalar_select 0, %s10, %s8
  $region1: #{cembedder_forward.1} parent=0
    #allocation2 [shape = 'u8[163840]{0}', space=vmem, size = 0x28000, scoped, tag = 'input window, operand 3, single buffered']
    #allocation3 [shape = 's32[1]{0}', space=sflag, size = 0x4, scoped, tag = 'scoped memory for cembedder_forward.1']
    #allocation4 [shape = 'u8[81920]{0}', space=vmem, size = 0x14000, scoped, tag = 'input window, operand 5, single buffered']
    #allocation5 [shape = 's32[1]{0}', space=sflag, size = 0x4, scoped, tag = 'scoped memory for cembedder_forward.1']
    %12 = vsyncpa [#allocation3], 0
    %13 = vsyncpa [#allocation5], 0
    // Predicated region
    $region2: #{cembedder_forward.1} parent=1 // pred_check
      _
    $region3: #{cembedder_forward.1} parent=1 // pred_check_branch
      %15 = sbr.rel (0) target = $region5
    $region4: #{cembedder_forward.1} parent=1 // pred_region
      _
    $region5: #{cembedder_forward.1} parent=1 // pred_fallthru
      _
    // Predicated region
    $region6: #{cembedder_forward.1} parent=1 // pred_check
      _
    $region7: #{cembedder_forward.1} parent=1 // pred_check_branch
      %17 = sbr.rel (0) target = $region9
    $region8: #{cembedder_forward.1} parent=1 // pred_region
      _
    $region9: #{cembedder_forward.1} parent=1 // pred_fallthru
      _
    // Predicated region
    $region10: #{cembedder_forward.1} parent=1 // pred_check
      _
    $region11: #{cembedder_forward.1} parent=1 // pred_check_branch
      %19 = sbr.rel (0) target = $region13
    $region12: #{cembedder_forward.1} parent=1 // pred_region
      _
    $region13: #{cembedder_forward.1} parent=1 // pred_fallthru
      _
    // Predicated region
    $region14: #{cembedder_forward.1} parent=1 // pred_check
      _
    $region15: #{cembedder_forward.1} parent=1 // pred_check_branch
      %21 = sbr.rel (0) target = $region17
    $region16: #{cembedder_forward.1} parent=1 // pred_region
      %s23 = ssub.s32 5120, 5120
      %24 = vsyncadd [#allocation3], %s23
      %s25 = sshll.u32 [#allocation2], 4
      %s26 = int_to_ptr.vmem [resolvable:$true] %s25
      %31 = dma.hbm_to_vmem [thread:$0]  %s3, 5120, %s26, [#allocation3], 256, 256, 16
    $region17: #{cembedder_forward.1} parent=1 // pred_fallthru
      _
    // Predicated region
    $region18: #{cembedder_forward.1} parent=1 // pred_check
      _
    $region19: #{cembedder_forward.1} parent=1 // pred_check_branch
      %33 = sbr.rel (0) target = $region21
    $region20: #{cembedder_forward.1} parent=1 // pred_region
      _
    $region21: #{cembedder_forward.1} parent=1 // pred_fallthru
      _
    // Predicated region
    $region22: #{cembedder_forward.1} parent=1 // pred_check
      _
    $region23: #{cembedder_forward.1} parent=1 // pred_check_branch
      %35 = sbr.rel (0) target = $region25
    $region24: #{cembedder_forward.1} parent=1 // pred_region
      %s37 = ssub.s32 2560, 2560
      %38 = vsyncadd [#allocation5], %s37
      %s39 = sshll.u32 [#allocation4], 4
      %s40 = int_to_ptr.vmem [resolvable:$true] %s39
      %45 = dma.hbm_to_vmem [thread:$0]  %s5, 2560, %s40, [#allocation5], 128, 128, 8
    $region25: #{cembedder_forward.1} parent=1 // pred_fallthru
      _
    // Predicated region
    $region26: #{cembedder_forward.1} parent=1 // pred_check
      _
    $region27: #{cembedder_forward.1} parent=1 // pred_check_branch
      %47 = sbr.rel (0) target = $region29
    $region28: #{cembedder_forward.1} parent=1 // pred_region
      _
    $region29: #{cembedder_forward.1} parent=1 // pred_fallthru
      _
    // Predicated region
    $region30: #{cembedder_forward.1} parent=1 // pred_check
      _
    $region31: #{cembedder_forward.1} parent=1 // pred_check_branch
      %49 = sbr.rel (0) target = $region33
    $region32: #{cembedder_forward.1} parent=1 // pred_region
      %50 = dma.done [#allocation3], 5120
    $region33: #{cembedder_forward.1} parent=1 // pred_fallthru
      _
    // Predicated region
    $region34: #{cembedder_forward.1} parent=1 // pred_check
      _
    $region35: #{cembedder_forward.1} parent=1 // pred_check_branch
      %52 = sbr.rel (0) target = $region37
    $region36: #{cembedder_forward.1} parent=1 // pred_region
      %53 = dma.done [#allocation5], 2560
    $region37: #{cembedder_forward.1} parent=1 // pred_fallthru
      _
    %v54 = vld [vmem:[%s0] sm:$0xff]
    %v55 = vld [vmem:[%s1] sm:$0xff]
    %v56 = vld [vmem:[%s1 + $0x8] sm:$0xff]
    %v57 = vld [vmem:[%s1 + $0x10] sm:$0xff]
    %v58 = vld [vmem:[%s1 + $0x18] sm:$0xff]
    %v59 = vld [vmem:[%s1 + $0x20] sm:$0xff]
    %v60 = vld [vmem:[%s1 + $0x28] sm:$0xff]
    %v61 = vld [vmem:[%s1 + $0x30] sm:$0xff]
    %v62 = vld [vmem:[%s1 + $0x38] sm:$0xff]
    %v63 = vld [vmem:[%s2] sm:$0x3]
    %v65 = vlaneseq
    %v66 = vshrl.u32 %v65, 7
    %v67 = vsub.s32 0, %v66
    %v68 = vrot.slane %v63, %v67
    %v69 = vlaneseq
    %v70 = vshrl.u32 %v69, 7
    %v71 = vsub.s32 1, %v70
    %v72 = vrot.slane %v63, %v71
    %vm75 = vcmask 261120
    %v77 = vsel %vm75, %v54, 0
    %79 = vmatprep.subr.mxu0 %v56
    %80 = vmatpush1.msra.mxu0 %v55
    %81 = vmatprep.subr.mxu0 %v58
    %82 = vmatpush1.msra.mxu0 %v57
    %83 = vmatprep.subr.mxu0 %v60
    %84 = vmatpush1.msra.mxu0 %v59
    %85 = vmatprep.subr.mxu0 %v62
    %86 = vmatpush1.msra.mxu0 %v61
    %87 = vmatprep.subr.mxu0 0.0
    %88 = vmatpush1.msra.mxu0 0.0
    %89 = vmatprep.subr.mxu0 0.0
    %90 = vmatpush1.msra.mxu0 0.0
    %91 = vmatprep.subr.mxu0 0.0
    %92 = vmatpush1.msra.mxu0 0.0
    %93 = vmatprep.subr.mxu0 0.0
    %94 = vmatpush1.msra.mxu0 0.0
    %95 = vmatprep.subr.mxu0 0.0
    %96 = vmatpush1.msra.mxu0 0.0
    %97 = vmatprep.subr.mxu0 0.0
    %98 = vmatpush1.msra.mxu0 0.0
    %99 = vmatprep.subr.mxu0 0.0
    %100 = vmatpush1.msra.mxu0 0.0
    %101 = vmatprep.subr.mxu0 0.0
    %102 = vmatpush1.msra.mxu0 0.0
    %103 = vmatprep.subr.mxu0 0.0
    %104 = vmatpush1.msra.mxu0 0.0
    %105 = vmatprep.subr.mxu0 0.0
    %106 = vmatpush1.msra.mxu0 0.0
    %107 = vmatprep.subr.mxu0 0.0
    %108 = vmatpush1.msra.mxu0 0.0
    %109 = vmatprep.subr.mxu0 0.0
    %110 = vmatpush1.msra.mxu0 0.0
    %111 = vmatprep.subr.mxu0 0.0
    %112 = vmatpush1.msra.mxu0 0.0
    %113 = vmatprep.subr.mxu0 0.0
    %114 = vmatpush1.msra.mxu0 0.0
    %115 = vmatprep.subr.mxu0 0.0
    %116 = vmatpush1.msra.mxu0 0.0
    %117 = vmatprep.subr.mxu0 0.0
    %118 = vmatpush1.msra.mxu0 0.0
    %119 = vmatprep.subr.mxu0 0.0
    %120 = vmatpush1.msra.mxu0 0.0
    %121 = vmatprep.subr.mxu0 0.0
    %122 = vmatpush1.msra.mxu0 0.0
    %123 = vmatprep.subr.mxu0 0.0
    %124 = vmatpush1.msra.mxu0 0.0
    %125 = vmatprep.subr.mxu0 0.0
    %126 = vmatpush1.msra.mxu0 0.0
    %127 = vmatprep.subr.mxu0 0.0
    %128 = vmatpush1.msra.mxu0 0.0
    %129 = vmatprep.subr.mxu0 0.0
    %130 = vmatpush1.msra.mxu0 0.0
    %131 = vmatprep.subr.mxu0 0.0
    %132 = vmatpush1.msra.mxu0 0.0
    %133 = vmatprep.subr.mxu0 0.0
    %134 = vmatpush1.msra.mxu0 0.0
    %135 = vmatprep.subr.mxu0 0.0
    %136 = vmatpush1.msra.mxu0 0.0
    %137 = vmatprep.subr.mxu0 0.0
    %138 = vmatpush1.msra.mxu0 0.0
    %139 = vmatprep.subr.mxu0 0.0
    %140 = vmatpush1.msra.mxu0 0.0
    %141 = vmatprep.subr.mxu0 0.0
    %142 = vmatpush1.msra.mxu0 0.0
    %143 = vmatprep.mubr.f32.mxu0 0.0
    %144 = vmatmul.mubr.f32.gmra.mrb[0].mxu0 %v77
    %v145 = vpop.f32.mrb[0].mxu0
    %v146 = vadd.f32 %v68, %v145
    %v147 = vpop.f32.mrb[0].mxu0
    %v148 = vadd.f32 %v72, %v147
    %149 = vdwg.mxu0
    %v150 = vmax.f32 %v146, 0.0
    %v151 = vmax.f32 %v148, 0.0
    %v152 = vld [vmem:[#allocation2] sm:$0xff]
    %v153 = vld [vmem:[#allocation2 + $0x8] sm:$0xff]
    %v154 = vld [vmem:[#allocation2 + $0x10] sm:$0xff]
    %v155 = vld [vmem:[#allocation2 + $0x18] sm:$0xff]
    %v156 = vld [vmem:[#allocation2 + $0x20] sm:$0xff]
    %v157 = vld [vmem:[#allocation2 + $0x28] sm:$0xff]
    %v158 = vld [vmem:[#allocation2 + $0x30] sm:$0xff]
    %v159 = vld [vmem:[#allocation2 + $0x38] sm:$0xff]
    %v160 = vld [vmem:[#allocation2 + $0x40] sm:$0xff]
    %v161 = vld [vmem:[#allocation2 + $0x48] sm:$0xff]
    %v162 = vld [vmem:[#allocation2 + $0x50] sm:$0xff]
    %v163 = vld [vmem:[#allocation2 + $0x58] sm:$0xff]
    %v164 = vld [vmem:[#allocation2 + $0x60] sm:$0xff]
    %v165 = vld [vmem:[#allocation2 + $0x68] sm:$0xff]
    %v166 = vld [vmem:[#allocation2 + $0x70] sm:$0xff]
    %v167 = vld [vmem:[#allocation2 + $0x78] sm:$0xff]
    %v168 = vld [vmem:[#allocation2 + $0x80] sm:$0xff]
    %v169 = vld [vmem:[#allocation2 + $0x88] sm:$0xff]
    %v170 = vld [vmem:[#allocation2 + $0x90] sm:$0xff]
    %v171 = vld [vmem:[#allocation2 + $0x98] sm:$0xff]
    %v172 = vld [vmem:[#allocation2 + $0xa0] sm:$0xff]
    %v173 = vld [vmem:[#allocation2 + $0xa8] sm:$0xff]
    %v174 = vld [vmem:[#allocation2 + $0xb0] sm:$0xff]
    %v175 = vld [vmem:[#allocation2 + $0xb8] sm:$0xff]
    %v176 = vld [vmem:[#allocation2 + $0xc0] sm:$0xff]
    %v177 = vld [vmem:[#allocation2 + $0xc8] sm:$0xff]
    %v178 = vld [vmem:[#allocation2 + $0xd0] sm:$0xff]
    %v179 = vld [vmem:[#allocation2 + $0xd8] sm:$0xff]
    %v180 = vld [vmem:[#allocation2 + $0xe0] sm:$0xff]
    %v181 = vld [vmem:[#allocation2 + $0xe8] sm:$0xff]
    %v182 = vld [vmem:[#allocation2 + $0xf0] sm:$0xff]
    %v183 = vld [vmem:[#allocation2 + $0xf8] sm:$0xff]
    %v184 = vld [vmem:[#allocation2 + $0x100] sm:$0xff]
    %v185 = vld [vmem:[#allocation2 + $0x108] sm:$0xff]
    %v186 = vld [vmem:[#allocation2 + $0x110] sm:$0xff]
    %v187 = vld [vmem:[#allocation2 + $0x118] sm:$0xff]
    %v188 = vld [vmem:[#allocation2 + $0x120] sm:$0xff]
    %v189 = vld [vmem:[#allocation2 + $0x128] sm:$0xff]
    %v190 = vld [vmem:[#allocation2 + $0x130] sm:$0xff]
    %v191 = vld [vmem:[#allocation2 + $0x138] sm:$0xff]
    %v192 = vld [vmem:[%s4] sm:$0x3]
    %v194 = vlaneseq
    %v195 = vshrl.u32 %v194, 7
    %v196 = vsub.s32 0, %v195
    %v197 = vrot.slane %v192, %v196
    %v198 = vlaneseq
    %v199 = vshrl.u32 %v198, 7
    %v200 = vsub.s32 1, %v199
    %v201 = vrot.slane %v192, %v200
    %v205 = vsel %vm75, %v151, 0
    %207 = vmatprep.subr.mxu0 %v153
    %208 = vmatpush1.msra.mxu0 %v152
    %209 = vmatprep.subr.mxu0 %v155
    %210 = vmatpush1.msra.mxu0 %v154
    %211 = vmatprep.subr.mxu0 %v157
    %212 = vmatpush1.msra.mxu0 %v156
    %213 = vmatprep.subr.mxu0 %v159
    %214 = vmatpush1.msra.mxu0 %v158
    %215 = vmatprep.subr.mxu0 %v161
    %216 = vmatpush1.msra.mxu0 %v160
    %217 = vmatprep.subr.mxu0 %v163
    %218 = vmatpush1.msra.mxu0 %v162
    %219 = vmatprep.subr.mxu0 %v165
    %220 = vmatpush1.msra.mxu0 %v164
    %221 = vmatprep.subr.mxu0 %v167
    %222 = vmatpush1.msra.mxu0 %v166
    %223 = vmatprep.subr.mxu0 %v169
    %224 = vmatpush1.msra.mxu0 %v168
    %225 = vmatprep.subr.mxu0 %v171
    %226 = vmatpush1.msra.mxu0 %v170
    %227 = vmatprep.subr.mxu0 %v173
    %228 = vmatpush1.msra.mxu0 %v172
    %229 = vmatprep.subr.mxu0 %v175
    %230 = vmatpush1.msra.mxu0 %v174
    %231 = vmatprep.subr.mxu0 %v177
    %232 = vmatpush1.msra.mxu0 %v176
    %233 = vmatprep.subr.mxu0 %v179
    %234 = vmatpush1.msra.mxu0 %v178
    %235 = vmatprep.subr.mxu0 %v181
    %236 = vmatpush1.msra.mxu0 %v180
    %237 = vmatprep.subr.mxu0 %v183
    %238 = vmatpush1.msra.mxu0 %v182
    %239 = vmatprep.subr.mxu0 %v185
    %240 = vmatpush1.msra.mxu0 %v184
    %241 = vmatprep.subr.mxu0 %v187
    %242 = vmatpush1.msra.mxu0 %v186
    %243 = vmatprep.subr.mxu0 %v189
    %244 = vmatpush1.msra.mxu0 %v188
    %245 = vmatprep.subr.mxu0 %v191
    %246 = vmatpush1.msra.mxu0 %v190
    %247 = vmatprep.subr.mxu0 0.0
    %248 = vmatpush1.msra.mxu0 0.0
    %249 = vmatprep.subr.mxu0 0.0
    %250 = vmatpush1.msra.mxu0 0.0
    %251 = vmatprep.subr.mxu0 0.0
    %252 = vmatpush1.msra.mxu0 0.0
    %253 = vmatprep.subr.mxu0 0.0
    %254 = vmatpush1.msra.mxu0 0.0
    %255 = vmatprep.subr.mxu0 0.0
    %256 = vmatpush1.msra.mxu0 0.0
    %257 = vmatprep.subr.mxu0 0.0
    %258 = vmatpush1.msra.mxu0 0.0
    %259 = vmatprep.subr.mxu0 0.0
    %260 = vmatpush1.msra.mxu0 0.0
    %261 = vmatprep.subr.mxu0 0.0
    %262 = vmatpush1.msra.mxu0 0.0
    %263 = vmatprep.subr.mxu0 0.0
    %264 = vmatpush1.msra.mxu0 0.0
    %265 = vmatprep.subr.mxu0 0.0
    %266 = vmatpush1.msra.mxu0 0.0
    %267 = vmatprep.subr.mxu0 0.0
    %268 = vmatpush1.msra.mxu0 0.0
    %269 = vmatprep.subr.mxu0 0.0
    %270 = vmatpush1.msra.mxu0 0.0
    %271 = vmatprep.mubr.f32.mxu0 %v205
    %272 = vmatmul.mubr.f32.gmra.mrb[0].mxu0 %v150
    %v273 = vpop.f32.mrb[0].mxu0
    %v274 = vadd.f32 %v197, %v273
    %v275 = vpop.f32.mrb[0].mxu0
    %v276 = vadd.f32 %v201, %v275
    %277 = vdwg.mxu0
    %v278 = vmax.f32 %v274, 0.0
    %v279 = vmax.f32 %v276, 0.0
    %v280 = vld [vmem:[#allocation4] sm:$0xff]
    %v281 = vld [vmem:[#allocation4 + $0x8] sm:$0xff]
    %v282 = vld [vmem:[#allocation4 + $0x10] sm:$0xff]
    %v283 = vld [vmem:[#allocation4 + $0x18] sm:$0xff]
    %v284 = vld [vmem:[#allocation4 + $0x20] sm:$0xff]
    %v285 = vld [vmem:[#allocation4 + $0x28] sm:$0xff]
    %v286 = vld [vmem:[#allocation4 + $0x30] sm:$0xff]
    %v287 = vld [vmem:[#allocation4 + $0x38] sm:$0xff]
    %v288 = vld [vmem:[#allocation4 + $0x40] sm:$0xff]
    %v289 = vld [vmem:[#allocation4 + $0x48] sm:$0xff]
    %v290 = vld [vmem:[#allocation4 + $0x50] sm:$0xff]
    %v291 = vld [vmem:[#allocation4 + $0x58] sm:$0xff]
    %v292 = vld [vmem:[#allocation4 + $0x60] sm:$0xff]
    %v293 = vld [vmem:[#allocation4 + $0x68] sm:$0xff]
    %v294 = vld [vmem:[#allocation4 + $0x70] sm:$0xff]
    %v295 = vld [vmem:[#allocation4 + $0x78] sm:$0xff]
    %v296 = vld [vmem:[#allocation4 + $0x80] sm:$0xff]
    %v297 = vld [vmem:[#allocation4 + $0x88] sm:$0xff]
    %v298 = vld [vmem:[#allocation4 + $0x90] sm:$0xff]
    %v299 = vld [vmem:[#allocation4 + $0x98] sm:$0xff]
    %v300 = vld [vmem:[%s6] sm:$0x1]
    %v302 = vlaneseq
    %v303 = vshrl.u32 %v302, 7
    %v304 = vsub.s32 0, %v303
    %v305 = vrot.slane %v300, %v304
    %v308 = vsel %vm75, %v279, 0
    %310 = vmatprep.subr.mxu0 0.0
    %311 = vmatpush1.msra.mxu0 %v280
    %312 = vmatprep.subr.mxu0 0.0
    %313 = vmatpush1.msra.mxu0 %v281
    %314 = vmatprep.subr.mxu0 0.0
    %315 = vmatpush1.msra.mxu0 %v282
    %316 = vmatprep.subr.mxu0 0.0
    %317 = vmatpush1.msra.mxu0 %v283
    %318 = vmatprep.subr.mxu0 0.0
    %319 = vmatpush1.msra.mxu0 %v284
    %320 = vmatprep.subr.mxu0 0.0
    %321 = vmatpush1.msra.mxu0 %v285
    %322 = vmatprep.subr.mxu0 0.0
    %323 = vmatpush1.msra.mxu0 %v286
    %324 = vmatprep.subr.mxu0 0.0
    %325 = vmatpush1.msra.mxu0 %v287
    %326 = vmatprep.subr.mxu0 0.0
    %327 = vmatpush1.msra.mxu0 %v288
    %328 = vmatprep.subr.mxu0 0.0
    %329 = vmatpush1.msra.mxu0 %v289
    %330 = vmatprep.subr.mxu0 0.0
    %331 = vmatpush1.msra.mxu0 %v290
    %332 = vmatprep.subr.mxu0 0.0
    %333 = vmatpush1.msra.mxu0 %v291
    %334 = vmatprep.subr.mxu0 0.0
    %335 = vmatpush1.msra.mxu0 %v292
    %336 = vmatprep.subr.mxu0 0.0
    %337 = vmatpush1.msra.mxu0 %v293
    %338 = vmatprep.subr.mxu0 0.0
    %339 = vmatpush1.msra.mxu0 %v294
    %340 = vmatprep.subr.mxu0 0.0
    %341 = vmatpush1.msra.mxu0 %v295
    %342 = vmatprep.subr.mxu0 0.0
    %343 = vmatpush1.msra.mxu0 %v296
    %344 = vmatprep.subr.mxu0 0.0
    %345 = vmatpush1.msra.mxu0 %v297
    %346 = vmatprep.subr.mxu0 0.0
    %347 = vmatpush1.msra.mxu0 %v298
    %348 = vmatprep.subr.mxu0 0.0
    %349 = vmatpush1.msra.mxu0 %v299
    %350 = vmatprep.subr.mxu0 0.0
    %351 = vmatpush1.msra.mxu0 0.0
    %352 = vmatprep.subr.mxu0 0.0
    %353 = vmatpush1.msra.mxu0 0.0
    %354 = vmatprep.subr.mxu0 0.0
    %355 = vmatpush1.msra.mxu0 0.0
    %356 = vmatprep.subr.mxu0 0.0
    %357 = vmatpush1.msra.mxu0 0.0
    %358 = vmatprep.subr.mxu0 0.0
    %359 = vmatpush1.msra.mxu0 0.0
    %360 = vmatprep.subr.mxu0 0.0
    %361 = vmatpush1.msra.mxu0 0.0
    %362 = vmatprep.subr.mxu0 0.0
    %363 = vmatpush1.msra.mxu0 0.0
    %364 = vmatprep.subr.mxu0 0.0
    %365 = vmatpush1.msra.mxu0 0.0
    %366 = vmatprep.subr.mxu0 0.0
    %367 = vmatpush1.msra.mxu0 0.0
    %368 = vmatprep.subr.mxu0 0.0
    %369 = vmatpush1.msra.mxu0 0.0
    %370 = vmatprep.subr.mxu0 0.0
    %371 = vmatpush1.msra.mxu0 0.0
    %372 = vmatprep.subr.mxu0 0.0
    %373 = vmatpush1.msra.mxu0 0.0
    %374 = vmatprep.mubr.f32.mxu0 %v308
    %375 = vmatmul.mubr.f32.gmra.mrb[0].mxu0 %v278
    %v376 = vpop.f32.mrb[0].mxu0
    %v377 = vadd.f32 %v305, %v376
    %v378 = vpop.f32.mrb[0].mxu0
    %379 = vdwg.mxu0
    %v380 = vxor.u32 %v377, 2147483648
    %v381 = vmul.f32 %v380, 1.442695
    %v382 = vpow.pop %v381
    %v383 = vadd.f32 %v382, 1.0
    %v384 = vrcp.pop %v383
    %v385 = vmul.f32 1.0, %v384
    %386 = vst [vmem:[%s7] sm:$0xff] %v385
    // Predicated region
    $region38: #{cembedder_forward.1} parent=1 // pred_check
      _
    $region39: #{cembedder_forward.1} parent=1 // pred_check_branch
      %388 = sbr.rel (0) target = $region41
    $region40: #{cembedder_forward.1} parent=1 // pred_region
      _
    $region41: #{cembedder_forward.1} parent=1 // pred_fallthru
      _
    // Predicated region
    $region42: #{cembedder_forward.1} parent=1 // pred_check
      _
    $region43: #{cembedder_forward.1} parent=1 // pred_check_branch
      %390 = sbr.rel (0) target = $region45
    $region44: #{cembedder_forward.1} parent=1 // pred_region
      _
    $region45: #{cembedder_forward.1} parent=1 // pred_fallthru
      _
    %391 = vsyncpa [#allocation3], 1
    %392 = vsyncpa [#allocation5], 1

</llo_original>
